<compile_context>
chip_gen: v7x
topology: tpu7x:2x2x1
jax: 0.10.0
libtpu: 0.0.40
codegen_flags: <defaults>
</compile_context>

<pallas_src>
import functools

import jax
import jax.numpy as jnp
from jax.experimental import pallas as pl
from jax.experimental.pallas import tpu as pltpu


def _round_up(n, m):
    return (n + m - 1) // m * m


# ---------------------------------------------------------------------------
# Kernel: one grid step = one RevNet block applied to one batch tile.
# Grid = (m_tiles ["parallel"], num_blocks ["arbitrary"]).
# The output tile (index independent of the block axis) is the carried state.
# ---------------------------------------------------------------------------
def _revnet_block_kernel(x_ref,
                         wf1_ref, bf1_ref, wf2_ref, bf2_ref,
                         wg1_ref, bg1_ref, wg2_ref, bg2_ref,
                         out_ref):
    blk = pl.program_id(1)

    # First block of this batch tile: seed the resident state from the input.
    @pl.when(blk == 0)
    def _():
        out_ref[...] = x_ref[...]

    cdt = wf1_ref.dtype                       # MXU operand dtype (bf16)

    x1 = out_ref[0]                           # [tm, half_p] f32
    x2 = out_ref[1]                           # [tm, half_p] f32

    # F(x2): Linear -> ReLU -> Linear   (bf16 operands, f32 accumulate)
    h = jnp.dot(x2.astype(cdt), wf1_ref[0],
                preferred_element_type=jnp.float32) + bf1_ref[0]
    h = jnp.maximum(h, 0.0)
    f_o = jnp.dot(h.astype(cdt), wf2_ref[0],
                  preferred_element_type=jnp.float32) + bf2_ref[0]
    y1 = x1 + f_o

    # G(y1): Linear -> ReLU -> Linear
    h = jnp.dot(y1.astype(cdt), wg1_ref[0],
                preferred_element_type=jnp.float32) + bg1_ref[0]
    h = jnp.maximum(h, 0.0)
    g_o = jnp.dot(h.astype(cdt), wg2_ref[0],
                  preferred_element_type=jnp.float32) + bg2_ref[0]
    y2 = x2 + g_o

    out_ref[0] = y1
    out_ref[1] = y2


def _vmem_limit_bytes(tm, half_p, hid_p):
    """Size the scoped VMEM limit from the actual resident working set."""
    state_tile = 2 * tm * half_p * 4                     # f32 state tile
    w_block = (2 * half_p * hid_p + 2 * hid_p * half_p) * 2   # 4 bf16 mats / block
    b_block = 2 * (hid_p + half_p) * 4                   # f32 biases / block
    need = 3 * state_tile + 2 * (w_block + b_block) + (4 << 20)
    return int(min(max(need, 16 << 20), 64 << 20))       # stay under v7x physical


# ---------------------------------------------------------------------------
# Hot-path entry: packed state in, packed state out (no pad/stack/concat).
# ---------------------------------------------------------------------------
def revnet_forward_packed(state, packed, *, batch_tile):
    """state: [2, B_p, half_p] f32 with B_p % batch_tile == 0."""
    nb, half_p, hid_p = packed["wf1"].shape
    two, B_p, half_p2 = state.shape
    assert two == 2 and half_p2 == half_p
    tm = batch_tile
    assert B_p % tm == 0
    m_tiles = B_p // tm

    state_spec = pl.BlockSpec((2, tm, half_p), lambda m, b: (0, m, 0))
    w_spec = lambda d0, d1: pl.BlockSpec((1, d0, d1), lambda m, b: (b, 0, 0))
    b_spec = lambda d1: pl.BlockSpec((1, 1, d1), lambda m, b: (b, 0, 0))

    grid_spec = pltpu.PrefetchScalarGridSpec(
        num_scalar_prefetch=0,
        grid=(m_tiles, nb),
        in_specs=[state_spec,
                  w_spec(half_p, hid_p), b_spec(hid_p),
                  w_spec(hid_p, half_p), b_spec(half_p),
                  w_spec(half_p, hid_p), b_spec(hid_p),
                  w_spec(hid_p, half_p), b_spec(half_p)],
        out_specs=pl.BlockSpec((2, tm, half_p), lambda m, b: (0, m, 0)),
    )

    return pl.pallas_call(
        _revnet_block_kernel,
        out_shape=jax.ShapeDtypeStruct((2, B_p, half_p), jnp.float32),
        grid_spec=grid_spec,
        input_output_aliases={0: 0},          # state buffer donated to the output
        compiler_params=pltpu.CompilerParams(
            dimension_semantics=("parallel", "arbitrary"),
            vmem_limit_bytes=_vmem_limit_bytes(tm, half_p, hid_p),
        ),
    )(state,
      packed["wf1"], packed["bf1"], packed["wf2"], packed["bf2"],
      packed["wg1"], packed["bg1"], packed["wg2"], packed["bg2"])


# ---------------------------------------------------------------------------
# Convenience wrapper: [B, in_features] <-> packed [2, B_p, half_p].
# For stacked RevNet layers, call pack_state once, revnet_forward_packed per
# layer, unpack_state once at the model boundary instead.
# ---------------------------------------------------------------------------
def choose_batch_tile(B, max_batch_tile=256):
    return min(_round_up(B, 8), max_batch_tile)


def pack_state(x, half_p, batch_tile):
    B, in_features = x.shape
    half = in_features // 2
    B_p = _round_up(B, batch_tile)
    x1 = jnp.pad(x[:, :half], ((0, B_p - B), (0, half_p - half)))
    x2 = jnp.pad(x[:, half:], ((0, B_p - B), (0, half_p - half)))
    return jnp.stack([x1, x2], axis=0).astype(jnp.float32)


def unpack_state(state, B, half):
    return jnp.concatenate([state[0, :B, :half], state[1, :B, :half]], axis=1)


@functools.partial(jax.jit, static_argnames=("max_batch_tile",))
def revnet_forward(x, packed, max_batch_tile=256):
    """x: [B, in_features] f32.  packed: padded/stacked params (pack_revnet_params)."""
    B, in_features = x.shape
    assert in_features % 2 == 0, "in_features must be even"
    half = in_features // 2
    nb, half_p, hid_p = packed["wf1"].shape

    tm = choose_batch_tile(B, max_batch_tile)
    state = pack_state(x, half_p, tm)
    out = revnet_forward_packed(state, packed, batch_tile=tm)
    return unpack_state(out, B, half)


# ---------------------------------------------------------------------------
# Parameter init / packing (PyTorch-style uniform init; weights [in, out]).
# ---------------------------------------------------------------------------
def init_revnet_params(key, number_blocks, in_features, hidden_size):
    half = in_features // 2

    def linear(key, fan_in, fan_out):
        kw, kb = jax.random.split(key)
        bound = 1.0 / jnp.sqrt(jnp.float32(fan_in))
        w = jax.random.uniform(kw, (fan_in, fan_out), jnp.float32, -bound, bound)
        b = jax.random.uniform(kb, (1, fan_out), jnp.float32, -bound, bound)
        return w, b

    wf1, bf1, wf2, bf2 = [], [], [], []
    wg1, bg1, wg2, bg2 = [], [], [], []
    for i in range(number_blocks):
        k = jax.random.fold_in(key, i)
        k1, k2, k3, k4 = jax.random.split(k, 4)
        w, b = linear(k1, half, hidden_size); wf1.append(w); bf1.append(b)
        w, b = linear(k2, hidden_size, half); wf2.append(w); bf2.append(b)
        w, b = linear(k3, half, hidden_size); wg1.append(w); bg1.append(b)
        w, b = linear(k4, hidden_size, half); wg2.append(w); bg2.append(b)

    stack = lambda xs: jnp.stack(xs, axis=0)
    return {
        "wf1": stack(wf1), "bf1": stack(bf1), "wf2": stack(wf2), "bf2": stack(bf2),
        "wg1": stack(wg1), "bg1": stack(bg1), "wg2": stack(wg2), "bg2": stack(bg2),
    }


def pack_revnet_params(params, weight_dtype=jnp.bfloat16, lane_multiple=128):
    """Pad feature dims to `lane_multiple` lanes, cast weights (biases stay f32)."""
    nb, half, hidden = params["wf1"].shape
    half_p = _round_up(half, lane_multiple)
    hid_p = _round_up(hidden, lane_multiple)

    def pad3(a, d1, d2):
        return jnp.pad(a, ((0, 0), (0, d1 - a.shape[1]), (0, d2 - a.shape[2])))

    return {
        "wf1": pad3(params["wf1"], half_p, hid_p).astype(weight_dtype),
        "bf1": pad3(params["bf1"], 1, hid_p).astype(jnp.float32),
        "wf2": pad3(params["wf2"], hid_p, half_p).astype(weight_dtype),
        "bf2": pad3(params["bf2"], 1, half_p).astype(jnp.float32),
        "wg1": pad3(params["wg1"], half_p, hid_p).astype(weight_dtype),
        "bg1": pad3(params["bg1"], 1, hid_p).astype(jnp.float32),
        "wg2": pad3(params["wg2"], hid_p, half_p).astype(weight_dtype),
        "bg2": pad3(params["bg2"], 1, half_p).astype(jnp.float32),
    }


def revnet_reference(x, params, cast_dtype=None):
    """Pure-JAX reference of the PyTorch forward.

    cast_dtype=None  -> exact f32 module semantics.
    cast_dtype=bf16  -> mirrors the kernel's mixed precision (bf16 matmul
                        operands, f32 accumulation / biases / residuals).
    """
    nb = params["wf1"].shape[0]
    half = x.shape[1] // 2

    def mm(a, w):
        if cast_dtype is not None:
            a = a.astype(cast_dtype)
            w = w.astype(cast_dtype)
        return jnp.dot(a, w, preferred_element_type=jnp.float32)

    for i in range(nb):
        x1, x2 = x[:, :half], x[:, half:]
        h = jnp.maximum(mm(x2, params["wf1"][i]) + params["bf1"][i], 0.0)
        f_o = mm(h, params["wf2"][i]) + params["bf2"][i]
        y1 = x1 + f_o
        h = jnp.maximum(mm(y1, params["wg1"][i]) + params["bg1"][i], 0.0)
        g_o = mm(h, params["wg2"][i]) + params["bg2"][i]
        y2 = x2 + g_o
        x = jnp.concatenate([y1, y2], axis=1)
    return x


if __name__ == "__main__":
    number_blocks = 3
    in_features = 32      # half = 16
    hidden_size = 32
    batch = 8

    key = jax.random.PRNGKey(0)
    kx, kp = jax.random.split(key)
    x = jax.random.normal(kx, (batch, in_features), jnp.float32)

    params = init_revnet_params(kp, number_blocks, in_features, hidden_size)
    packed = pack_revnet_params(params, weight_dtype=jnp.bfloat16)

    out = jax.block_until_ready(revnet_forward(x, packed, max_batch_tile=256))
    assert out.shape == (batch, in_features)

    # Tight check: precision-matched reference (bf16 operand casts, f32 accumulate).
    ref_matched = revnet_reference(x, params, cast_dtype=jnp.bfloat16)
    assert jnp.allclose(out, ref_matched, atol=1e-4, rtol=1e-4), "mismatch vs matched reference"

    # Sanity check vs. exact f32 module semantics (difference == bf16 quantization).
    ref_f32 = revnet_reference(x, params)
    assert jnp.allclose(out, ref_f32, atol=5e-2, rtol=5e-2), "mismatch vs f32 reference"

    # Second config: exercise multiple batch tiles on the "parallel" grid axis
    # plus padded batch rows (B=20, tile=16 -> B_p=32, m_tiles=2).
    x_big = jax.random.normal(jax.random.fold_in(kx, 1), (20, in_features), jnp.float32)
    out_big = jax.block_until_ready(revnet_forward(x_big, packed, max_batch_tile=16))
    ref_big = revnet_reference(x_big, params, cast_dtype=jnp.bfloat16)
    assert out_big.shape == (20, in_features)
    assert jnp.allclose(out_big, ref_big, atol=1e-4, rtol=1e-4), "mismatch (multi-tile)"

    print("KERNEL_OK")
</pallas_src>

<mosaic_0001>
module attributes {stable_mosaic.version = 11 : i64} {
  func.func @_revnet_block_kernel(%arg0: i32, %arg1: i32, %arg2: memref<2x8x128xf32, #tpu.memory_space<vmem>>, %arg3: memref<1x128x128xbf16, #tpu.memory_space<vmem>>, %arg4: memref<1x1x128xf32, #tpu.memory_space<vmem>>, %arg5: memref<1x128x128xbf16, #tpu.memory_space<vmem>>, %arg6: memref<1x1x128xf32, #tpu.memory_space<vmem>>, %arg7: memref<1x128x128xbf16, #tpu.memory_space<vmem>>, %arg8: memref<1x1x128xf32, #tpu.memory_space<vmem>>, %arg9: memref<1x128x128xbf16, #tpu.memory_space<vmem>>, %arg10: memref<1x1x128xf32, #tpu.memory_space<vmem>>, %arg11: memref<2x8x128xf32, #tpu.memory_space<vmem>>) attributes {dimension_semantics = [#tpu.dimension_semantics<parallel>, #tpu.dimension_semantics<arbitrary>], iteration_bounds = array<i64: 1, 3>, scalar_prefetch = 0 : i64, scratch_operands = 0 : i64, tpu.core_type = #tpu.core_type<tc>, window_params = [{transform_indices = @transform_0, window_bounds = array<i64: 2, 8, 128>}, {transform_indices = @transform_1, window_bounds = array<i64: 1, 128, 128>}, {transform_indices = @transform_2, window_bounds = array<i64: 1, 1, 128>}, {transform_indices = @transform_3, window_bounds = array<i64: 1, 128, 128>}, {transform_indices = @transform_4, window_bounds = array<i64: 1, 1, 128>}, {transform_indices = @transform_5, window_bounds = array<i64: 1, 128, 128>}, {transform_indices = @transform_6, window_bounds = array<i64: 1, 1, 128>}, {transform_indices = @transform_7, window_bounds = array<i64: 1, 128, 128>}, {transform_indices = @transform_8, window_bounds = array<i64: 1, 1, 128>}, {transform_indices = @transform_9, window_bounds = array<i64: 2, 8, 128>}]} {
    %c0_i32 = arith.constant 0 : i32
    %0 = arith.cmpi eq, %arg1, %c0_i32 : i32
    %1 = arith.extui %0 : i1 to i32
    %c0_i32_0 = arith.constant 0 : i32
    %2 = arith.cmpi ne, %1, %c0_i32_0 : i32
    scf.if %2 {
      %c0_40 = arith.constant 0 : index
      %c0_41 = arith.constant 0 : index
      %c0_42 = arith.constant 0 : index
      %51 = vector.load %arg2[%c0_40, %c0_41, %c0_42] : memref<2x8x128xf32, #tpu.memory_space<vmem>>, vector<2x8x128xf32>
      %c0_43 = arith.constant 0 : index
      %c0_44 = arith.constant 0 : index
      %c0_45 = arith.constant 0 : index
      %52 = vector.load %arg11[%c0_43, %c0_44, %c0_45] : memref<2x8x128xf32, #tpu.memory_space<vmem>>, vector<2x8x128xf32>
      tpu.vector_store %arg11[%c0_43, %c0_44, %c0_45], %51 {strides = array<i32>} : memref<2x8x128xf32, #tpu.memory_space<vmem>>, vector<2x8x128xf32>,
    } else {
    }
    %c0 = arith.constant 0 : index
    %c0_1 = arith.constant 0 : index
    %c0_2 = arith.constant 0 : index
    %3 = vector.load %arg11[%c0, %c0_1, %c0_2] : memref<2x8x128xf32, #tpu.memory_space<vmem>>, vector<1x8x128xf32>
    %4 = vector.shape_cast %3 : vector<1x8x128xf32> to vector<8x128xf32>
    %c1 = arith.constant 1 : index
    %c0_3 = arith.constant 0 : index
    %c0_4 = arith.constant 0 : index
    %5 = vector.load %arg11[%c1, %c0_3, %c0_4] : memref<2x8x128xf32, #tpu.memory_space<vmem>>, vector<1x8x128xf32>
    %6 = vector.shape_cast %5 : vector<1x8x128xf32> to vector<8x128xf32>
    %7 = arith.truncf %6 : vector<8x128xf32> to vector<8x128xbf16>
    %c0_5 = arith.constant 0 : index
    %c0_6 = arith.constant 0 : index
    %c0_7 = arith.constant 0 : index
    %8 = vector.load %arg3[%c0_5, %c0_6, %c0_7] : memref<1x128x128xbf16, #tpu.memory_space<vmem>>, vector<1x128x128xbf16>
    %9 = vector.shape_cast %8 : vector<1x128x128xbf16> to vector<128x128xbf16>
    %cst = arith.constant dense<0.000000e+00> : vector<8x128xf32>
    %10 = tpu.matmul %7, %9, %cst {dimension_numbers = #tpu.dot_dimension_numbers<[1], [0], [0], [1], [0, 0, 1, 1], [], []>} : vector<8x128xbf16>, vector<128x128xbf16>, vector<8x128xf32> -> vector<8x128xf32>
    %c0_8 = arith.constant 0 : index
    %c0_9 = arith.constant 0 : index
    %c0_10 = arith.constant 0 : index
    %11 = vector.load %arg4[%c0_8, %c0_9, %c0_10] : memref<1x1x128xf32, #tpu.memory_space<vmem>>, vector<1x1x128xf32>
    %12 = vector.shape_cast %11 : vector<1x1x128xf32> to vector<1x128xf32>
    %13 = vector.broadcast %12 : vector<1x128xf32> to vector<8x128xf32>
    %14 = arith.addf %10, %13 : vector<8x128xf32>
    %cst_11 = arith.constant 0.000000e+00 : f32
    %15 = vector.broadcast %cst_11 : f32 to vector<8x128xf32>
    %16 = arith.maximumf %14, %15 : vector<8x128xf32>
    %17 = arith.truncf %16 : vector<8x128xf32> to vector<8x128xbf16>
    %c0_12 = arith.constant 0 : index
    %c0_13 = arith.constant 0 : index
    %c0_14 = arith.constant 0 : index
    %18 = vector.load %arg5[%c0_12, %c0_13, %c0_14] : memref<1x128x128xbf16, #tpu.memory_space<vmem>>, vector<1x128x128xbf16>
    %19 = vector.shape_cast %18 : vector<1x128x128xbf16> to vector<128x128xbf16>
    %cst_15 = arith.constant dense<0.000000e+00> : vector<8x128xf32>
    %20 = tpu.matmul %17, %19, %cst_15 {dimension_numbers = #tpu.dot_dimension_numbers<[1], [0], [0], [1], [0, 0, 1, 1], [], []>} : vector<8x128xbf16>, vector<128x128xbf16>, vector<8x128xf32> -> vector<8x128xf32>
    %c0_16 = arith.constant 0 : index
    %c0_17 = arith.constant 0 : index
    %c0_18 = arith.constant 0 : index
    %21 = vector.load %arg6[%c0_16, %c0_17, %c0_18] : memref<1x1x128xf32, #tpu.memory_space<vmem>>, vector<1x1x128xf32>
    %22 = vector.shape_cast %21 : vector<1x1x128xf32> to vector<1x128xf32>
    %23 = vector.broadcast %22 : vector<1x128xf32> to vector<8x128xf32>
    %24 = arith.addf %20, %23 : vector<8x128xf32>
    %25 = arith.addf %4, %24 : vector<8x128xf32>
    %26 = arith.truncf %25 : vector<8x128xf32> to vector<8x128xbf16>
    %c0_19 = arith.constant 0 : index
    %c0_20 = arith.constant 0 : index
    %c0_21 = arith.constant 0 : index
    %27 = vector.load %arg7[%c0_19, %c0_20, %c0_21] : memref<1x128x128xbf16, #tpu.memory_space<vmem>>, vector<1x128x128xbf16>
    %28 = vector.shape_cast %27 : vector<1x128x128xbf16> to vector<128x128xbf16>
    %cst_22 = arith.constant dense<0.000000e+00> : vector<8x128xf32>
    %29 = tpu.matmul %26, %28, %cst_22 {dimension_numbers = #tpu.dot_dimension_numbers<[1], [0], [0], [1], [0, 0, 1, 1], [], []>} : vector<8x128xbf16>, vector<128x128xbf16>, vector<8x128xf32> -> vector<8x128xf32>
    %c0_23 = arith.constant 0 : index
    %c0_24 = arith.constant 0 : index
    %c0_25 = arith.constant 0 : index
    %30 = vector.load %arg8[%c0_23, %c0_24, %c0_25] : memref<1x1x128xf32, #tpu.memory_space<vmem>>, vector<1x1x128xf32>
    %31 = vector.shape_cast %30 : vector<1x1x128xf32> to vector<1x128xf32>
    %32 = vector.broadcast %31 : vector<1x128xf32> to vector<8x128xf32>
    %33 = arith.addf %29, %32 : vector<8x128xf32>
    %cst_26 = arith.constant 0.000000e+00 : f32
    %34 = vector.broadcast %cst_26 : f32 to vector<8x128xf32>
    %35 = arith.maximumf %33, %34 : vector<8x128xf32>
    %36 = arith.truncf %35 : vector<8x128xf32> to vector<8x128xbf16>
    %c0_27 = arith.constant 0 : index
    %c0_28 = arith.constant 0 : index
    %c0_29 = arith.constant 0 : index
    %37 = vector.load %arg9[%c0_27, %c0_28, %c0_29] : memref<1x128x128xbf16, #tpu.memory_space<vmem>>, vector<1x128x128xbf16>
    %38 = vector.shape_cast %37 : vector<1x128x128xbf16> to vector<128x128xbf16>
    %cst_30 = arith.constant dense<0.000000e+00> : vector<8x128xf32>
    %39 = tpu.matmul %36, %38, %cst_30 {dimension_numbers = #tpu.dot_dimension_numbers<[1], [0], [0], [1], [0, 0, 1, 1], [], []>} : vector<8x128xbf16>, vector<128x128xbf16>, vector<8x128xf32> -> vector<8x128xf32>
    %c0_31 = arith.constant 0 : index
    %c0_32 = arith.constant 0 : index
    %c0_33 = arith.constant 0 : index
    %40 = vector.load %arg10[%c0_31, %c0_32, %c0_33] : memref<1x1x128xf32, #tpu.memory_space<vmem>>, vector<1x1x128xf32>
    %41 = vector.shape_cast %40 : vector<1x1x128xf32> to vector<1x128xf32>
    %42 = vector.broadcast %41 : vector<1x128xf32> to vector<8x128xf32>
    %43 = arith.addf %39, %42 : vector<8x128xf32>
    %44 = arith.addf %6, %43 : vector<8x128xf32>
    %c0_34 = arith.constant 0 : index
    %c0_35 = arith.constant 0 : index
    %c0_36 = arith.constant 0 : index
    %45 = vector.load %arg11[%c0_34, %c0_35, %c0_36] : memref<2x8x128xf32, #tpu.memory_space<vmem>>, vector<1x8x128xf32>
    %46 = vector.shape_cast %45 : vector<1x8x128xf32> to vector<8x128xf32>
    %47 = vector.shape_cast %25 : vector<8x128xf32> to vector<1x8x128xf32>
    tpu.vector_store %arg11[%c0_34, %c0_35, %c0_36], %47 {strides = array<i32>} : memref<2x8x128xf32, #tpu.memory_space<vmem>>, vector<1x8x128xf32>,
    %c1_37 = arith.constant 1 : index
    %c0_38 = arith.constant 0 : index
    %c0_39 = arith.constant 0 : index
    %48 = vector.load %arg11[%c1_37, %c0_38, %c0_39] : memref<2x8x128xf32, #tpu.memory_space<vmem>>, vector<1x8x128xf32>
    %49 = vector.shape_cast %48 : vector<1x8x128xf32> to vector<8x128xf32>
    %50 = vector.shape_cast %44 : vector<8x128xf32> to vector<1x8x128xf32>
    tpu.vector_store %arg11[%c1_37, %c0_38, %c0_39], %50 {strides = array<i32>} : memref<2x8x128xf32, #tpu.memory_space<vmem>>, vector<1x8x128xf32>,
    return
  }
  func.func @transform_0(%arg0: i32, %arg1: i32) -> (i32, i32, i32) {
    %c0_i32 = arith.constant 0 : i32
    %c0_i32_0 = arith.constant 0 : i32
    %c0_i32_1 = arith.constant 0 : i32
    return %c0_i32, %arg0, %c0_i32_0 : i32, i32, i32
  }
  func.func @transform_1(%arg0: i32, %arg1: i32) -> (i32, i32, i32) {
    %c0_i32 = arith.constant 0 : i32
    %c0_i32_0 = arith.constant 0 : i32
    %c0_i32_1 = arith.constant 0 : i32
    return %arg1, %c0_i32, %c0_i32_0 : i32, i32, i32
  }
  func.func @transform_2(%arg0: i32, %arg1: i32) -> (i32, i32, i32) {
    %c0_i32 = arith.constant 0 : i32
    %c0_i32_0 = arith.constant 0 : i32
    %c0_i32_1 = arith.constant 0 : i32
    return %arg1, %c0_i32, %c0_i32_0 : i32, i32, i32
  }
  func.func @transform_3(%arg0: i32, %arg1: i32) -> (i32, i32, i32) {
    %c0_i32 = arith.constant 0 : i32
    %c0_i32_0 = arith.constant 0 : i32
    %c0_i32_1 = arith.constant 0 : i32
    return %arg1, %c0_i32, %c0_i32_0 : i32, i32, i32
  }
  func.func @transform_4(%arg0: i32, %arg1: i32) -> (i32, i32, i32) {
    %c0_i32 = arith.constant 0 : i32
    %c0_i32_0 = arith.constant 0 : i32
    %c0_i32_1 = arith.constant 0 : i32
    return %arg1, %c0_i32, %c0_i32_0 : i32, i32, i32
  }
  func.func @transform_5(%arg0: i32, %arg1: i32) -> (i32, i32, i32) {
    %c0_i32 = arith.constant 0 : i32
    %c0_i32_0 = arith.constant 0 : i32
    %c0_i32_1 = arith.constant 0 : i32
    return %arg1, %c0_i32, %c0_i32_0 : i32, i32, i32
  }
  func.func @transform_6(%arg0: i32, %arg1: i32) -> (i32, i32, i32) {
    %c0_i32 = arith.constant 0 : i32
    %c0_i32_0 = arith.constant 0 : i32
    %c0_i32_1 = arith.constant 0 : i32
    return %arg1, %c0_i32, %c0_i32_0 : i32, i32, i32
  }
  func.func @transform_7(%arg0: i32, %arg1: i32) -> (i32, i32, i32) {
    %c0_i32 = arith.constant 0 : i32
    %c0_i32_0 = arith.constant 0 : i32
    %c0_i32_1 = arith.constant 0 : i32
    return %arg1, %c0_i32, %c0_i32_0 : i32, i32, i32
  }
  func.func @transform_8(%arg0: i32, %arg1: i32) -> (i32, i32, i32) {
    %c0_i32 = arith.constant 0 : i32
    %c0_i32_0 = arith.constant 0 : i32
    %c0_i32_1 = arith.constant 0 : i32
    return %arg1, %c0_i32, %c0_i32_0 : i32, i32, i32
  }
  func.func @transform_9(%arg0: i32, %arg1: i32) -> (i32, i32, i32) {
    %c0_i32 = arith.constant 0 : i32
    %c0_i32_0 = arith.constant 0 : i32
    %c0_i32_1 = arith.constant 0 : i32
    return %c0_i32, %arg0, %c0_i32_0 : i32, i32, i32
  }
}

</mosaic_0001>

<llo_original>
// kernel: revnet_forward.1
$region0: #{revnet_forward.1}
  #allocation0 [shape = 'u32[]', space=smem, size = 0x4, offset = 0x4, fixed_abs, tag = 'smem constant byte address 0x4 - core index']
  #allocation1 [shape = 'u32[144,128]{1,0:T(1,128)}', space=vmem, size = 0x12000, scoped, tag = 'internal scratch']
  %s0 = inlined_call_operand.vmem [shape: f32[2,8,128], index: 0, kind: input, shape index: {}, may-alias: {0,9}]
  %s1 = inlined_call_operand.hbm [shape: bf16[3,128,128], index: 1, kind: input, shape index: {}]
  %s2 = inlined_call_operand.vmem [shape: f32[3,1,128], index: 2, kind: input, shape index: {}]
  %s3 = inlined_call_operand.hbm [shape: bf16[3,128,128], index: 3, kind: input, shape index: {}]
  %s4 = inlined_call_operand.vmem [shape: f32[3,1,128], index: 4, kind: input, shape index: {}]
  %s5 = inlined_call_operand.hbm [shape: bf16[3,128,128], index: 5, kind: input, shape index: {}]
  %s6 = inlined_call_operand.vmem [shape: f32[3,1,128], index: 6, kind: input, shape index: {}]
  %s7 = inlined_call_operand.hbm [shape: bf16[3,128,128], index: 7, kind: input, shape index: {}]
  %s8 = inlined_call_operand.vmem [shape: f32[3,1,128], index: 8, kind: input, shape index: {}]
  %s9 = inlined_call_operand.vmem [shape: f32[2,8,128], index: 9, kind: output, shape index: {}, may-alias: {0,9}]
  %s10 = sld [smem:[#allocation0]]
  $region89: #{revnet_forward.1} parent=0
    _
  %s12 = ssub.s32 1, %s10
  %s13 = scalar_select 0, %s12, %s10
  $region1: #{revnet_forward.1} parent=0
    #allocation2 [shape = 'u8[65536]{0}', space=vmem, size = 0x10000, scoped, tag = 'input window, operand 1']
    #allocation3 [shape = 's32[2]{0}', space=sflag, size = 0x8, scoped, tag = 'scoped memory for revnet_forward.1']
    #allocation4 [shape = 'u8[65536]{0}', space=vmem, size = 0x10000, scoped, tag = 'input window, operand 3']
    #allocation5 [shape = 's32[2]{0}', space=sflag, size = 0x8, scoped, tag = 'scoped memory for revnet_forward.1']
    #allocation6 [shape = 'u8[65536]{0}', space=vmem, size = 0x10000, scoped, tag = 'input window, operand 5']
    #allocation7 [shape = 'u8[65536]{0}', space=vmem, size = 0x10000, scoped, tag = 'input window, operand 7']
    #allocation8 [shape = 's32[2]{0}', space=sflag, size = 0x8, scoped, tag = 'scoped memory for revnet_forward.1']
    %14 = vsyncpa [#allocation3], 0
    %s15 = scalar_lea.sflag [#allocation3], 1
    %16 = vsyncpa %s15, 0
    %17 = vsyncpa [#allocation5], 0
    %s18 = scalar_lea.sflag [#allocation5], 1
    %19 = vsyncpa %s18, 0
    %20 = vsyncpa [#allocation8], 0
    %s21 = scalar_lea.sflag [#allocation8], 1
    %22 = vsyncpa %s21, 0
    loop: start=0, step=1, limit=5
    $region2: #{revnet_forward.1} parent=1 // loop_pre_header
      _
    $region3: #{revnet_forward.1} parent=1 // loop_header
      %s24 = sphi 0, %s28
      %p25 = scmp.ge.s32.totalorder %s24, 5
      %s31 = sphi 0, %s43
      %s32 = sphi 0, %s39
      %s33 = sphi 0, %s31
      %s34 = sphi 0, %s32
      %s35 = sphi 0, %s33
      %s36 = sphi 0, %s34
      %s46 = sphi 0, %s48
      %s49 = sphi 0, %s46
      %s50 = sphi 0, %s49
      %s66 = sphi 0, %s50
      %s72 = sphi 0, %s74
      %s75 = sphi 0, %s72
      %s76 = sphi 0, %s75
      %s92 = sphi 0, %s76
      %s98 = sphi 0, %s100
      %s101 = sphi 0, %s98
      %s102 = sphi 0, %s101
      %s118 = sphi 0, %s102
      %s124 = sphi 0, %s126
      %s127 = sphi 0, %s124
      %s128 = sphi 0, %s127
      %s144 = sphi 0, %s128
      %s150 = sphi 0, %s152
      %s153 = sphi 0, %s150
      %s154 = sphi 0, %s153
      %s170 = sphi 0, %s154
      %s176 = sphi 0, %s178
      %s179 = sphi 0, %s176
      %s180 = sphi 0, %s179
      %s196 = sphi 0, %s180
      %s202 = sphi 0, %s204
      %s205 = sphi 0, %s202
      %s206 = sphi 0, %s205
      %s222 = sphi 0, %s206
      %s228 = sphi 0, %s230
      %s231 = sphi 0, %s228
      %s232 = sphi 0, %s231
      %s248 = sphi 0, %s232
      %s254 = sphi 0, %s256
      %s257 = sphi 0, %s254
      %s258 = sphi 0, %s257
      %s274 = sphi 0, %s258
      %s280 = sphi 0, %s282
      %s283 = sphi 0, %s280
      %s284 = sphi 0, %s283
      %s300 = sphi 0, %s284
    $region4: #{revnet_forward.1} parent=1 // loop_header_branch
      %27 = sbr.rel (%p25) target = $region8
    $region5: #{revnet_forward.1} parent=1 // loop_body
      %s29 = ssub.s32 %s24, 1
      %s30 = ssub.s32 %s24, 2
      %s37 = sadd.s32 1, %s32
      %p38 = scmp.ge.s32.totalorder %s37, 3
      %s39 = scalar_select %p38, 0, %s37
      %s40 = sadd.s32 1, %s31
      %s41 = scalar_select %p38, %s40, %s31
      %p42 = scmp.ge.s32.totalorder %s41, 1
      %s43 = scalar_select %p42, 0, %s41
      %s44 = ssub.s32 %s31, %s43
      %p45 = scmp.eq.s32.totalorder %s44, 0
      %s47 = sadd.s32 %s46, 1
      %s48 = scalar_select %p45, %s46, %s47
      %p51 = pneg %p45
      %p52 = scmp.eq.s32.totalorder %s24, 2
      %p53 = por %p51, %p52
      %p54 = scmp.ne.s32.totalorder %s46, %s49
      %p55 = scmp.eq.s32.totalorder %s24, 0
      %p56 = por %p54, %p55
      %p57 = scmp.ne.s32.totalorder %s46, %s49
      %p58 = scmp.eq.s32.totalorder %s29, 2
      %p59 = por %p57, %p58
      %p60 = scmp.ne.s32.totalorder %s49, %s50
      %p61 = scmp.eq.s32.totalorder %s29, 0
      %p62 = por %p60, %p61
      %p63 = scmp.ne.s32.totalorder %s49, %s50
      %p64 = scmp.eq.s32.totalorder %s30, 2
      %p65 = por %p63, %p64
      %p67 = scmp.ne.s32.totalorder %s50, %s66
      %p68 = scmp.eq.s32.totalorder %s30, 0
      %p69 = por %p67, %p68
      %s70 = ssub.s32 %s32, %s39
      %p71 = scmp.eq.s32.totalorder %s70, 0
      %s73 = sadd.s32 %s72, 1
      %s74 = scalar_select %p71, %s72, %s73
      %p77 = pneg %p71
      %p78 = scmp.eq.s32.totalorder %s24, 2
      %p79 = por %p77, %p78
      %p80 = scmp.ne.s32.totalorder %s72, %s75
      %p81 = scmp.eq.s32.totalorder %s24, 0
      %p82 = por %p80, %p81
      %p83 = scmp.ne.s32.totalorder %s72, %s75
      %p84 = scmp.eq.s32.totalorder %s29, 2
      %p85 = por %p83, %p84
      %p86 = scmp.ne.s32.totalorder %s75, %s76
      %p87 = scmp.eq.s32.totalorder %s29, 0
      %p88 = por %p86, %p87
      %p89 = scmp.ne.s32.totalorder %s75, %s76
      %p90 = scmp.eq.s32.totalorder %s30, 2
      %p91 = por %p89, %p90
      %p93 = scmp.ne.s32.totalorder %s76, %s92
      %p94 = scmp.eq.s32.totalorder %s30, 0
      %p95 = por %p93, %p94
      %s96 = ssub.s32 %s32, %s39
      %p97 = scmp.eq.s32.totalorder %s96, 0
      %s99 = sadd.s32 %s98, 1
      %s100 = scalar_select %p97, %s98, %s99
      %p103 = pneg %p97
      %p104 = scmp.eq.s32.totalorder %s24, 2
      %p105 = por %p103, %p104
      %p106 = scmp.ne.s32.totalorder %s98, %s101
      %p107 = scmp.eq.s32.totalorder %s24, 0
      %p108 = por %p106, %p107
      %p109 = scmp.ne.s32.totalorder %s98, %s101
      %p110 = scmp.eq.s32.totalorder %s29, 2
      %p111 = por %p109, %p110
      %p112 = scmp.ne.s32.totalorder %s101, %s102
      %p113 = scmp.eq.s32.totalorder %s29, 0
      %p114 = por %p112, %p113
      %p115 = scmp.ne.s32.totalorder %s101, %s102
      %p116 = scmp.eq.s32.totalorder %s30, 2
      %p117 = por %p115, %p116
      %p119 = scmp.ne.s32.totalorder %s102, %s118
      %p120 = scmp.eq.s32.totalorder %s30, 0
      %p121 = por %p119, %p120
      %s122 = ssub.s32 %s32, %s39
      %p123 = scmp.eq.s32.totalorder %s122, 0
      %s125 = sadd.s32 %s124, 1
      %s126 = scalar_select %p123, %s124, %s125
      %p129 = pneg %p123
      %p130 = scmp.eq.s32.totalorder %s24, 2
      %p131 = por %p129, %p130
      %p132 = scmp.ne.s32.totalorder %s124, %s127
      %p133 = scmp.eq.s32.totalorder %s24, 0
      %p134 = por %p132, %p133
      %p135 = scmp.ne.s32.totalorder %s124, %s127
      %p136 = scmp.eq.s32.totalorder %s29, 2
      %p137 = por %p135, %p136
      %p138 = scmp.ne.s32.totalorder %s127, %s128
      %p139 = scmp.eq.s32.totalorder %s29, 0
      %p140 = por %p138, %p139
      %p141 = scmp.ne.s32.totalorder %s127, %s128
      %p142 = scmp.eq.s32.totalorder %s30, 2
      %p143 = por %p141, %p142
      %p145 = scmp.ne.s32.totalorder %s128, %s144
      %p146 = scmp.eq.s32.totalorder %s30, 0
      %p147 = por %p145, %p146
      %s148 = ssub.s32 %s32, %s39
      %p149 = scmp.eq.s32.totalorder %s148, 0
      %s151 = sadd.s32 %s150, 1
      %s152 = scalar_select %p149, %s150, %s151
      %p155 = pneg %p149
      %p156 = scmp.eq.s32.totalorder %s24, 2
      %p157 = por %p155, %p156
      %p158 = scmp.ne.s32.totalorder %s150, %s153
      %p159 = scmp.eq.s32.totalorder %s24, 0
      %p160 = por %p158, %p159
      %p161 = scmp.ne.s32.totalorder %s150, %s153
      %p162 = scmp.eq.s32.totalorder %s29, 2
      %p163 = por %p161, %p162
      %p164 = scmp.ne.s32.totalorder %s153, %s154
      %p165 = scmp.eq.s32.totalorder %s29, 0
      %p166 = por %p164, %p165
      %p167 = scmp.ne.s32.totalorder %s153, %s154
      %p168 = scmp.eq.s32.totalorder %s30, 2
      %p169 = por %p167, %p168
      %p171 = scmp.ne.s32.totalorder %s154, %s170
      %p172 = scmp.eq.s32.totalorder %s30, 0
      %p173 = por %p171, %p172
      %s174 = ssub.s32 %s32, %s39
      %p175 = scmp.eq.s32.totalorder %s174, 0
      %s177 = sadd.s32 %s176, 1
      %s178 = scalar_select %p175, %s176, %s177
      %p181 = pneg %p175
      %p182 = scmp.eq.s32.totalorder %s24, 2
      %p183 = por %p181, %p182
      %p184 = scmp.ne.s32.totalorder %s176, %s179
      %p185 = scmp.eq.s32.totalorder %s24, 0
      %p186 = por %p184, %p185
      %p187 = scmp.ne.s32.totalorder %s176, %s179
      %p188 = scmp.eq.s32.totalorder %s29, 2
      %p189 = por %p187, %p188
      %p190 = scmp.ne.s32.totalorder %s179, %s180
      %p191 = scmp.eq.s32.totalorder %s29, 0
      %p192 = por %p190, %p191
      %p193 = scmp.ne.s32.totalorder %s179, %s180
      %p194 = scmp.eq.s32.totalorder %s30, 2
      %p195 = por %p193, %p194
      %p197 = scmp.ne.s32.totalorder %s180, %s196
      %p198 = scmp.eq.s32.totalorder %s30, 0
      %p199 = por %p197, %p198
      %s200 = ssub.s32 %s32, %s39
      %p201 = scmp.eq.s32.totalorder %s200, 0
      %s203 = sadd.s32 %s202, 1
      %s204 = scalar_select %p201, %s202, %s203
      %p207 = pneg %p201
      %p208 = scmp.eq.s32.totalorder %s24, 2
      %p209 = por %p207, %p208
      %p210 = scmp.ne.s32.totalorder %s202, %s205
      %p211 = scmp.eq.s32.totalorder %s24, 0
      %p212 = por %p210, %p211
      %p213 = scmp.ne.s32.totalorder %s202, %s205
      %p214 = scmp.eq.s32.totalorder %s29, 2
      %p215 = por %p213, %p214
      %p216 = scmp.ne.s32.totalorder %s205, %s206
      %p217 = scmp.eq.s32.totalorder %s29, 0
      %p218 = por %p216, %p217
      %p219 = scmp.ne.s32.totalorder %s205, %s206
      %p220 = scmp.eq.s32.totalorder %s30, 2
      %p221 = por %p219, %p220
      %p223 = scmp.ne.s32.totalorder %s206, %s222
      %p224 = scmp.eq.s32.totalorder %s30, 0
      %p225 = por %p223, %p224
      %s226 = ssub.s32 %s32, %s39
      %p227 = scmp.eq.s32.totalorder %s226, 0
      %s229 = sadd.s32 %s228, 1
      %s230 = scalar_select %p227, %s228, %s229
      %p233 = pneg %p227
      %p234 = scmp.eq.s32.totalorder %s24, 2
      %p235 = por %p233, %p234
      %p236 = scmp.ne.s32.totalorder %s228, %s231
      %p237 = scmp.eq.s32.totalorder %s24, 0
      %p238 = por %p236, %p237
      %p239 = scmp.ne.s32.totalorder %s228, %s231
      %p240 = scmp.eq.s32.totalorder %s29, 2
      %p241 = por %p239, %p240
      %p242 = scmp.ne.s32.totalorder %s231, %s232
      %p243 = scmp.eq.s32.totalorder %s29, 0
      %p244 = por %p242, %p243
      %p245 = scmp.ne.s32.totalorder %s231, %s232
      %p246 = scmp.eq.s32.totalorder %s30, 2
      %p247 = por %p245, %p246
      %p249 = scmp.ne.s32.totalorder %s232, %s248
      %p250 = scmp.eq.s32.totalorder %s30, 0
      %p251 = por %p249, %p250
      %s252 = ssub.s32 %s32, %s39
      %p253 = scmp.eq.s32.totalorder %s252, 0
      %s255 = sadd.s32 %s254, 1
      %s256 = scalar_select %p253, %s254, %s255
      %p259 = pneg %p253
      %p260 = scmp.eq.s32.totalorder %s24, 2
      %p261 = por %p259, %p260
      %p262 = scmp.ne.s32.totalorder %s254, %s257
      %p263 = scmp.eq.s32.totalorder %s24, 0
      %p264 = por %p262, %p263
      %p265 = scmp.ne.s32.totalorder %s254, %s257
      %p266 = scmp.eq.s32.totalorder %s29, 2
      %p267 = por %p265, %p266
      %p268 = scmp.ne.s32.totalorder %s257, %s258
      %p269 = scmp.eq.s32.totalorder %s29, 0
      %p270 = por %p268, %p269
      %p271 = scmp.ne.s32.totalorder %s257, %s258
      %p272 = scmp.eq.s32.totalorder %s30, 2
      %p273 = por %p271, %p272
      %p275 = scmp.ne.s32.totalorder %s258, %s274
      %p276 = scmp.eq.s32.totalorder %s30, 0
      %p277 = por %p275, %p276
      %s278 = ssub.s32 %s31, %s43
      %p279 = scmp.eq.s32.totalorder %s278, 0
      %s281 = sadd.s32 %s280, 1
      %s282 = scalar_select %p279, %s280, %s281
      %p285 = pneg %p279
      %p286 = scmp.eq.s32.totalorder %s24, 2
      %p287 = por %p285, %p286
      %p288 = scmp.ne.s32.totalorder %s280, %s283
      %p289 = scmp.eq.s32.totalorder %s24, 0
      %p290 = por %p288, %p289
      %p291 = scmp.ne.s32.totalorder %s280, %s283
      %p292 = scmp.eq.s32.totalorder %s29, 2
      %p293 = por %p291, %p292
      %p294 = scmp.ne.s32.totalorder %s283, %s284
      %p295 = scmp.eq.s32.totalorder %s29, 0
      %p296 = por %p294, %p295
      %p297 = scmp.ne.s32.totalorder %s283, %s284
      %p298 = scmp.eq.s32.totalorder %s30, 2
      %p299 = por %p297, %p298
      %p301 = scmp.ne.s32.totalorder %s284, %s300
      %p302 = scmp.eq.s32.totalorder %s30, 0
      %p303 = por %p301, %p302
      %p304 = scmp.le.s32.totalorder 1, %s24
      %p305 = scmp.lt.s32.totalorder %s24, 4
      %p306 = pnand %p304, %p305
      %p307 = pneg %p306
      // Predicated region
      $region9: #{revnet_forward.1} parent=5 // pred_check
        _
      $region10: #{revnet_forward.1} parent=5 // pred_check_branch
        %309 = sbr.rel (%p306) target = $region12
      $region11: #{revnet_forward.1} parent=5 // pred_region
        %s310 = ssub.s32 %s24, 1
        // Predicated region
        $region13: #{revnet_forward.1} parent=11 // pred_check
          %p311 = pneg %p62
        $region14: #{revnet_forward.1} parent=11 // pred_check_branch
          %313 = sbr.rel (%p311) target = $region16
        $region15: #{revnet_forward.1} parent=11 // pred_region
          %p314 = scmp.lt.s32.totalorder %s33, 0
          %s315 = scalar_select %p314, %s33, 0
          %s316 = smul.addr %s315, 8
          %s317 = scalar_lea.vmem %s0, %s316
        $region16: #{revnet_forward.1} parent=11 // pred_fallthru
          _
      $region12: #{revnet_forward.1} parent=5 // pred_fallthru
        _
      %p318 = scmp.lt.s32.totalorder %s24, 3
      // Predicated region
      $region17: #{revnet_forward.1} parent=5 // pred_check
        %p319 = pneg %p318
      $region18: #{revnet_forward.1} parent=5 // pred_check_branch
        %321 = sbr.rel (%p319) target = $region20
      $region19: #{revnet_forward.1} parent=5 // pred_region
        // Predicated region
        $region21: #{revnet_forward.1} parent=19 // pred_check
          %p322 = pneg %p82
        $region22: #{revnet_forward.1} parent=19 // pred_check_branch
          %324 = sbr.rel (%p322) target = $region24
        $region23: #{revnet_forward.1} parent=19 // pred_region
          %s325 = sand.u32 %s72, 1
          %s326 = scalar_lea.sflag [#allocation3], %s325
          %s327 = sand.u32 %s72, 1
          %s328 = smul.addr %s327, 64
          %s329 = scalar_lea.vmem [#allocation2], %s328
          %s331 = ssub.s32 1024, 1024
          %332 = vsyncadd %s326, %s331
          %s333 = smul.addr %s32, 16
          %s334 = smul.addr %s333, 64
          %s335 = scalar_lea.hbm %s1, %s334
          %s336 = sshll.u32 %s329, 4
          %s337 = int_to_ptr.vmem [resolvable:$true] %s336
          %342 = dma.hbm_to_vmem [thread:$0]  %s335, 1024, %s337, %s326, 64, 64, 4
        $region24: #{revnet_forward.1} parent=19 // pred_fallthru
          _
        // Predicated region
        $region25: #{revnet_forward.1} parent=19 // pred_check
          %p343 = pneg %p108
        $region26: #{revnet_forward.1} parent=19 // pred_check_branch
          %345 = sbr.rel (%p343) target = $region28
        $region27: #{revnet_forward.1} parent=19 // pred_region
          %p346 = scmp.lt.s32.totalorder %s32, 2
          %s347 = scalar_select %p346, %s32, 2
          %s348 = scalar_lea.vmem %s2, %s347
        $region28: #{revnet_forward.1} parent=19 // pred_fallthru
          _
        // Predicated region
        $region29: #{revnet_forward.1} parent=19 // pred_check
          %p349 = pneg %p134
        $region30: #{revnet_forward.1} parent=19 // pred_check_branch
          %351 = sbr.rel (%p349) target = $region32
        $region31: #{revnet_forward.1} parent=19 // pred_region
          %s352 = sand.u32 %s24, 1
          %s353 = scalar_lea.sflag [#allocation5], %s352
          %s354 = sand.u32 %s124, 1
          %s355 = smul.addr %s354, 64
          %s356 = scalar_lea.vmem [#allocation4], %s355
          %s358 = ssub.s32 1024, 1024
          %359 = vsyncadd %s353, %s358
          %s360 = smul.addr %s32, 16
          %s361 = smul.addr %s360, 64
          %s362 = scalar_lea.hbm %s3, %s361
          %s363 = sshll.u32 %s356, 4
          %s364 = int_to_ptr.vmem [resolvable:$true] %s363
          %369 = dma.hbm_to_vmem [thread:$0]  %s362, 1024, %s364, %s353, 64, 64, 4
        $region32: #{revnet_forward.1} parent=19 // pred_fallthru
          _
        // Predicated region
        $region33: #{revnet_forward.1} parent=19 // pred_check
          %p370 = pneg %p160
        $region34: #{revnet_forward.1} parent=19 // pred_check_branch
          %372 = sbr.rel (%p370) target = $region36
        $region35: #{revnet_forward.1} parent=19 // pred_region
          %p373 = scmp.lt.s32.totalorder %s32, 2
          %s374 = scalar_select %p373, %s32, 2
          %s375 = scalar_lea.vmem %s4, %s374
        $region36: #{revnet_forward.1} parent=19 // pred_fallthru
          _
        // Predicated region
        $region37: #{revnet_forward.1} parent=19 // pred_check
          %p376 = pneg %p186
        $region38: #{revnet_forward.1} parent=19 // pred_check_branch
          %378 = sbr.rel (%p376) target = $region40
        $region39: #{revnet_forward.1} parent=19 // pred_region
          %s379 = sand.u32 %s24, 1
          %s380 = scalar_lea.sflag [#allocation5], %s379
          %s381 = sand.u32 %s176, 1
          %s382 = smul.addr %s381, 64
          %s383 = scalar_lea.vmem [#allocation6], %s382
          %s385 = ssub.s32 1024, 1024
          %386 = vsyncadd %s380, %s385
          %s387 = smul.addr %s32, 16
          %s388 = smul.addr %s387, 64
          %s389 = scalar_lea.hbm %s5, %s388
          %s390 = sshll.u32 %s383, 4
          %s391 = int_to_ptr.vmem [resolvable:$true] %s390
          %396 = dma.hbm_to_vmem [thread:$0]  %s389, 1024, %s391, %s380, 64, 64, 4
        $region40: #{revnet_forward.1} parent=19 // pred_fallthru
          _
        // Predicated region
        $region41: #{revnet_forward.1} parent=19 // pred_check
          %p397 = pneg %p212
        $region42: #{revnet_forward.1} parent=19 // pred_check_branch
          %399 = sbr.rel (%p397) target = $region44
        $region43: #{revnet_forward.1} parent=19 // pred_region
          %p400 = scmp.lt.s32.totalorder %s32, 2
          %s401 = scalar_select %p400, %s32, 2
          %s402 = scalar_lea.vmem %s6, %s401
        $region44: #{revnet_forward.1} parent=19 // pred_fallthru
          _
        // Predicated region
        $region45: #{revnet_forward.1} parent=19 // pred_check
          %p403 = pneg %p238
        $region46: #{revnet_forward.1} parent=19 // pred_check_branch
          %405 = sbr.rel (%p403) target = $region48
        $region47: #{revnet_forward.1} parent=19 // pred_region
          %s406 = sand.u32 %s228, 1
          %s407 = scalar_lea.sflag [#allocation8], %s406
          %s408 = sand.u32 %s228, 1
          %s409 = smul.addr %s408, 64
          %s410 = scalar_lea.vmem [#allocation7], %s409
          %s412 = ssub.s32 1024, 1024
          %413 = vsyncadd %s407, %s412
          %s414 = smul.addr %s32, 16
          %s415 = smul.addr %s414, 64
          %s416 = scalar_lea.hbm %s7, %s415
          %s417 = sshll.u32 %s410, 4
          %s418 = int_to_ptr.vmem [resolvable:$true] %s417
          %423 = dma.hbm_to_vmem [thread:$0]  %s416, 1024, %s418, %s407, 64, 64, 4
        $region48: #{revnet_forward.1} parent=19 // pred_fallthru
          _
        // Predicated region
        $region49: #{revnet_forward.1} parent=19 // pred_check
          %p424 = pneg %p264
        $region50: #{revnet_forward.1} parent=19 // pred_check_branch
          %426 = sbr.rel (%p424) target = $region52
        $region51: #{revnet_forward.1} parent=19 // pred_region
          %p427 = scmp.lt.s32.totalorder %s32, 2
          %s428 = scalar_select %p427, %s32, 2
          %s429 = scalar_lea.vmem %s8, %s428
        $region52: #{revnet_forward.1} parent=19 // pred_fallthru
          _
      $region20: #{revnet_forward.1} parent=5 // pred_fallthru
        _
      %p430 = scmp.le.s32.totalorder 1, %s24
      %p431 = scmp.lt.s32.totalorder %s24, 4
      %p432 = pnand %p430, %p431
      %p433 = pneg %p432
      // Predicated region
      $region53: #{revnet_forward.1} parent=5 // pred_check
        _
      $region54: #{revnet_forward.1} parent=5 // pred_check_branch
        %435 = sbr.rel (%p432) target = $region56
      $region55: #{revnet_forward.1} parent=5 // pred_region
        %s436 = ssub.s32 %s24, 1
        %s437 = sand.u32 %s75, 1
        %s438 = scalar_lea.sflag [#allocation3], %s437
        %s439 = sand.u32 %s75, 1
        %s440 = smul.addr %s439, 64
        %s441 = scalar_lea.vmem [#allocation2], %s440
        // Predicated region
        $region57: #{revnet_forward.1} parent=55 // pred_check
          %p442 = pneg %p88
        $region58: #{revnet_forward.1} parent=55 // pred_check_branch
          %444 = sbr.rel (%p442) target = $region60
        $region59: #{revnet_forward.1} parent=55 // pred_region
          %445 = dma.done %s438, 1024
        $region60: #{revnet_forward.1} parent=55 // pred_fallthru
          _
        %s446 = sand.u32 %s29, 1
        %s447 = scalar_lea.sflag [#allocation5], %s446
        %s448 = sand.u32 %s127, 1
        %s449 = smul.addr %s448, 64
        %s450 = scalar_lea.vmem [#allocation4], %s449
        // Predicated region
        $region61: #{revnet_forward.1} parent=55 // pred_check
          %p451 = pneg %p140
        $region62: #{revnet_forward.1} parent=55 // pred_check_branch
          %453 = sbr.rel (%p451) target = $region64
        $region63: #{revnet_forward.1} parent=55 // pred_region
          %454 = dma.done %s447, 1024
        $region64: #{revnet_forward.1} parent=55 // pred_fallthru
          _
        %s455 = sand.u32 %s29, 1
        %s456 = scalar_lea.sflag [#allocation5], %s455
        %s457 = sand.u32 %s179, 1
        %s458 = smul.addr %s457, 64
        %s459 = scalar_lea.vmem [#allocation6], %s458
        // Predicated region
        $region65: #{revnet_forward.1} parent=55 // pred_check
          %p460 = pneg %p192
        $region66: #{revnet_forward.1} parent=55 // pred_check_branch
          %462 = sbr.rel (%p460) target = $region68
        $region67: #{revnet_forward.1} parent=55 // pred_region
          %463 = dma.done %s456, 1024
        $region68: #{revnet_forward.1} parent=55 // pred_fallthru
          _
        %s464 = sand.u32 %s231, 1
        %s465 = scalar_lea.sflag [#allocation8], %s464
        %s466 = sand.u32 %s231, 1
        %s467 = smul.addr %s466, 64
        %s468 = scalar_lea.vmem [#allocation7], %s467
        // Predicated region
        $region69: #{revnet_forward.1} parent=55 // pred_check
          %p469 = pneg %p244
        $region70: #{revnet_forward.1} parent=55 // pred_check_branch
          %471 = sbr.rel (%p469) target = $region72
        $region71: #{revnet_forward.1} parent=55 // pred_region
          %472 = dma.done %s465, 1024
        $region72: #{revnet_forward.1} parent=55 // pred_fallthru
          _
        %p473 = scmp.lt.s32.totalorder %s33, 0
        %s474 = scalar_select %p473, %s33, 0
        %s475 = smul.addr %s474, 8
        %s476 = scalar_lea.vmem %s0, %s475
        %p477 = pneg %p62
        %p478 = pneg %p59
        %s479 = sand.u32 %s75, 1
        %s480 = scalar_lea.sflag [#allocation3], %s479
        %s481 = sand.u32 %s75, 1
        %s482 = smul.addr %s481, 64
        %s483 = scalar_lea.vmem [#allocation2], %s482
        %p484 = pneg %p88
        %p485 = pneg %p85
        %p486 = scmp.lt.s32.totalorder %s34, 2
        %s487 = scalar_select %p486, %s34, 2
        %s488 = scalar_lea.vmem %s2, %s487
        %p489 = pneg %p114
        %p490 = pneg %p111
        %s491 = sand.u32 %s29, 1
        %s492 = scalar_lea.sflag [#allocation5], %s491
        %s493 = sand.u32 %s127, 1
        %s494 = smul.addr %s493, 64
        %s495 = scalar_lea.vmem [#allocation4], %s494
        %p496 = pneg %p140
        %p497 = pneg %p137
        %p498 = scmp.lt.s32.totalorder %s34, 2
        %s499 = scalar_select %p498, %s34, 2
        %s500 = scalar_lea.vmem %s4, %s499
        %p501 = pneg %p166
        %p502 = pneg %p163
        %s503 = sand.u32 %s29, 1
        %s504 = scalar_lea.sflag [#allocation5], %s503
        %s505 = sand.u32 %s179, 1
        %s506 = smul.addr %s505, 64
        %s507 = scalar_lea.vmem [#allocation6], %s506
        %p508 = pneg %p192
        %p509 = pneg %p189
        %p510 = scmp.lt.s32.totalorder %s34, 2
        %s511 = scalar_select %p510, %s34, 2
        %s512 = scalar_lea.vmem %s6, %s511
        %p513 = pneg %p218
        %p514 = pneg %p215
        %s515 = sand.u32 %s231, 1
        %s516 = scalar_lea.sflag [#allocation8], %s515
        %s517 = sand.u32 %s231, 1
        %s518 = smul.addr %s517, 64
        %s519 = scalar_lea.vmem [#allocation7], %s518
        %p520 = pneg %p244
        %p521 = pneg %p241
        %p522 = scmp.lt.s32.totalorder %s34, 2
        %s523 = scalar_select %p522, %s34, 2
        %s524 = scalar_lea.vmem %s8, %s523
        %p525 = pneg %p270
        %p526 = pneg %p267
        %p527 = pneg %p296
        %p528 = pneg %p293
        %p529 = scmp.lt.s32.totalorder %s33, 0
        %s530 = scalar_select %p529, %s33, 0
        %s531 = smul.addr %s530, 8
        %s532 = scalar_lea.vmem %s9, %s531
        %p533 = scmp.lt.s32.totalorder %s33, 0
        %s534 = scalar_select %p533, %s33, 0
        %s535 = smul.addr %s534, 8
        %s536 = scalar_lea.vmem %s0, %s535
        %p537 = scmp.lt.s32.totalorder %s34, 2
        %s538 = scalar_select %p537, %s34, 2
        %s539 = scalar_lea.vmem %s2, %s538
        %p540 = scmp.lt.s32.totalorder %s34, 2
        %s541 = scalar_select %p540, %s34, 2
        %s542 = scalar_lea.vmem %s4, %s541
        %p543 = scmp.lt.s32.totalorder %s34, 2
        %s544 = scalar_select %p543, %s34, 2
        %s545 = scalar_lea.vmem %s6, %s544
        %p546 = scmp.lt.s32.totalorder %s34, 2
        %s547 = scalar_select %p546, %s34, 2
        %s548 = scalar_lea.vmem %s8, %s547
        %p549 = scmp.lt.s32.totalorder %s33, 0
        %s550 = scalar_select %p549, %s33, 0
        %s551 = smul.addr %s550, 8
        %s552 = scalar_lea.vmem %s9, %s551
        %p554 = scmp.eq.s32.totalorder %s34, 0
        // Predicated region
        $region73: #{revnet_forward.1} parent=55 // pred_check
          %p555 = pneg %p554
        $region74: #{revnet_forward.1} parent=55 // pred_check_branch
          %557 = sbr.rel (%p555) target = $region76
        $region75: #{revnet_forward.1} parent=55 // pred_region
          %v558 = vld [vmem:[%s536] sm:$0xff]
          %v559 = vld [vmem:[%s536 + $0x8] sm:$0xff]
          %560 = vst [vmem:[%s552] sm:$0xff] %v558
          %561 = vst [vmem:[%s552 + $0x8] sm:$0xff] %v559
        $region76: #{revnet_forward.1} parent=55 // pred_fallthru
          _
        %v562 = vld [vmem:[%s552] sm:$0xff]
        %s563 = scalar_lea.vmem %s552, 8
        %v564 = vld [vmem:[%s563] sm:$0xff]
        %v565 = vpack.c.bf16 %v564, %v564
        %v566 = vld [vmem:[%s441] sm:$0xf]
        %v567 = vld [vmem:[%s441 + $0x4] sm:$0xf]
        %v568 = vld [vmem:[%s441 + $0x8] sm:$0xf]
        %v569 = vld [vmem:[%s441 + $0xc] sm:$0xf]
        %v570 = vld [vmem:[%s441 + $0x10] sm:$0xf]
        %v571 = vld [vmem:[%s441 + $0x14] sm:$0xf]
        %v572 = vld [vmem:[%s441 + $0x18] sm:$0xf]
        %v573 = vld [vmem:[%s441 + $0x1c] sm:$0xf]
        %v574 = vld [vmem:[%s441 + $0x20] sm:$0xf]
        %v575 = vld [vmem:[%s441 + $0x24] sm:$0xf]
        %v576 = vld [vmem:[%s441 + $0x28] sm:$0xf]
        %v577 = vld [vmem:[%s441 + $0x2c] sm:$0xf]
        %v578 = vld [vmem:[%s441 + $0x30] sm:$0xf]
        %v579 = vld [vmem:[%s441 + $0x34] sm:$0xf]
        %v580 = vld [vmem:[%s441 + $0x38] sm:$0xf]
        %v581 = vld [vmem:[%s441 + $0x3c] sm:$0xf]
        %v582 = vld [vmem:[%s539] sm:$0x1]
        %v584 = vlaneseq
        %v585 = vshrl.u32 %v584, 7
        %v586 = vsub.s32 0, %v585
        %v587 = vrot.slane %v582, %v586
        %v605 = vunpack.c.l.b16 %v566
        %v606 = vunpack.c.l.b16 %v567
        %v607 = vunpack.c.l.b16 %v568
        %v608 = vunpack.c.l.b16 %v569
        %v609 = vunpack.c.l.b16 %v570
        %v610 = vunpack.c.l.b16 %v571
        %v611 = vunpack.c.l.b16 %v572
        %v612 = vunpack.c.l.b16 %v573
        %v613 = vunpack.c.l.b16 %v574
        %v614 = vunpack.c.l.b16 %v575
        %v615 = vunpack.c.l.b16 %v576
        %v616 = vunpack.c.l.b16 %v577
        %v617 = vunpack.c.l.b16 %v578
        %v618 = vunpack.c.l.b16 %v579
        %v619 = vunpack.c.l.b16 %v580
        %v620 = vunpack.c.l.b16 %v581
        %v621 = vpack.c.b16 %v606, %v605
        %v622 = vpack.c.b16 %v608, %v607
        %v623 = vpack.c.b16 %v610, %v609
        %v624 = vpack.c.b16 %v612, %v611
        %v625 = vpack.c.b16 %v614, %v613
        %v626 = vpack.c.b16 %v616, %v615
        %v627 = vpack.c.b16 %v618, %v617
        %v628 = vpack.c.b16 %v620, %v619
        %637 = vmatprep.subr.bf16.mxu0 0
        %638 = vmatpush1.bf16.msra.mxu0 %v621
        %639 = vmatprep.subr.bf16.mxu0 0
        %640 = vmatpush1.bf16.msra.mxu0 %v622
        %641 = vmatprep.subr.bf16.mxu0 0
        %642 = vmatpush1.bf16.msra.mxu0 %v623
        %643 = vmatprep.subr.bf16.mxu0 0
        %644 = vmatpush1.bf16.msra.mxu0 %v624
        %645 = vmatprep.subr.bf16.mxu0 0
        %646 = vmatpush1.bf16.msra.mxu0 %v625
        %647 = vmatprep.subr.bf16.mxu0 0
        %648 = vmatpush1.bf16.msra.mxu0 %v626
        %649 = vmatprep.subr.bf16.mxu0 0
        %650 = vmatpush1.bf16.msra.mxu0 %v627
        %651 = vmatprep.subr.bf16.mxu0 0
        %652 = vmatpush1.bf16.msra.mxu0 %v628
        %653 = vmatprep.subr.bf16.mxu0 0
        %654 = vmatpush1.bf16.msra.mxu0 0
        %655 = vmatprep.subr.bf16.mxu0 0
        %656 = vmatpush1.bf16.msra.mxu0 0
        %657 = vmatprep.subr.bf16.mxu0 0
        %658 = vmatpush1.bf16.msra.mxu0 0
        %659 = vmatprep.subr.bf16.mxu0 0
        %660 = vmatpush1.bf16.msra.mxu0 0
        %661 = vmatprep.subr.bf16.mxu0 0
        %662 = vmatpush1.bf16.msra.mxu0 0
        %663 = vmatprep.subr.bf16.mxu0 0
        %664 = vmatpush1.bf16.msra.mxu0 0
        %665 = vmatprep.subr.bf16.mxu0 0
        %666 = vmatpush1.bf16.msra.mxu0 0
        %667 = vmatprep.subr.bf16.mxu0 0
        %668 = vmatpush1.bf16.msra.mxu0 0
        %669 = vmatprep.mubr.bf16.mxu0 0
        %670 = vmatmul.mubr.bf16.gmra.mrb[0].mxu0 %v565
        %v671 = vpop.f32.mrb[0].mxu0
        %v672 = vadd.f32 %v587, %v671
        %v673 = vpop.f32.mrb[0].mxu0
        %v674 = vpop.f32.mrb[0].mxu0
        %v675 = vpop.f32.mrb[0].mxu0
        %676 = vdwg.mxu0
        %v677 = vmax.f32 %v672, 0.0
        %v678 = vpack.c.bf16 %v677, %v677
        %v679 = vld [vmem:[%s450] sm:$0xf]
        %v680 = vld [vmem:[%s450 + $0x4] sm:$0xf]
        %v681 = vld [vmem:[%s450 + $0x8] sm:$0xf]
        %v682 = vld [vmem:[%s450 + $0xc] sm:$0xf]
        %v683 = vld [vmem:[%s450 + $0x10] sm:$0xf]
        %v684 = vld [vmem:[%s450 + $0x14] sm:$0xf]
        %v685 = vld [vmem:[%s450 + $0x18] sm:$0xf]
        %v686 = vld [vmem:[%s450 + $0x1c] sm:$0xf]
        %v687 = vld [vmem:[%s450 + $0x20] sm:$0xf]
        %v688 = vld [vmem:[%s450 + $0x24] sm:$0xf]
        %v689 = vld [vmem:[%s450 + $0x28] sm:$0xf]
        %v690 = vld [vmem:[%s450 + $0x2c] sm:$0xf]
        %v691 = vld [vmem:[%s450 + $0x30] sm:$0xf]
        %v692 = vld [vmem:[%s450 + $0x34] sm:$0xf]
        %v693 = vld [vmem:[%s450 + $0x38] sm:$0xf]
        %v694 = vld [vmem:[%s450 + $0x3c] sm:$0xf]
        %v695 = vld [vmem:[%s542] sm:$0x1]
        %v697 = vlaneseq
        %v698 = vshrl.u32 %v697, 7
        %v699 = vsub.s32 0, %v698
        %v700 = vrot.slane %v695, %v699
        %v718 = vunpack.c.l.b16 %v679
        %v719 = vunpack.c.l.b16 %v680
        %v720 = vunpack.c.l.b16 %v681
        %v721 = vunpack.c.l.b16 %v682
        %v722 = vunpack.c.l.b16 %v683
        %v723 = vunpack.c.l.b16 %v684
        %v724 = vunpack.c.l.b16 %v685
        %v725 = vunpack.c.l.b16 %v686
        %v726 = vunpack.c.l.b16 %v687
        %v727 = vunpack.c.l.b16 %v688
        %v728 = vunpack.c.l.b16 %v689
        %v729 = vunpack.c.l.b16 %v690
        %v730 = vunpack.c.l.b16 %v691
        %v731 = vunpack.c.l.b16 %v692
        %v732 = vunpack.c.l.b16 %v693
        %v733 = vunpack.c.l.b16 %v694
        %v734 = vpack.c.b16 %v719, %v718
        %v735 = vpack.c.b16 %v721, %v720
        %v736 = vpack.c.b16 %v723, %v722
        %v737 = vpack.c.b16 %v725, %v724
        %v738 = vpack.c.b16 %v727, %v726
        %v739 = vpack.c.b16 %v729, %v728
        %v740 = vpack.c.b16 %v731, %v730
        %v741 = vpack.c.b16 %v733, %v732
        %750 = vmatprep.subr.bf16.mxu0 0
        %751 = vmatpush1.bf16.msra.mxu0 %v734
        %752 = vmatprep.subr.bf16.mxu0 0
        %753 = vmatpush1.bf16.msra.mxu0 %v735
        %754 = vmatprep.subr.bf16.mxu0 0
        %755 = vmatpush1.bf16.msra.mxu0 %v736
        %756 = vmatprep.subr.bf16.mxu0 0
        %757 = vmatpush1.bf16.msra.mxu0 %v737
        %758 = vmatprep.subr.bf16.mxu0 0
        %759 = vmatpush1.bf16.msra.mxu0 %v738
        %760 = vmatprep.subr.bf16.mxu0 0
        %761 = vmatpush1.bf16.msra.mxu0 %v739
        %762 = vmatprep.subr.bf16.mxu0 0
        %763 = vmatpush1.bf16.msra.mxu0 %v740
        %764 = vmatprep.subr.bf16.mxu0 0
        %765 = vmatpush1.bf16.msra.mxu0 %v741
        %766 = vmatprep.subr.bf16.mxu0 0
        %767 = vmatpush1.bf16.msra.mxu0 0
        %768 = vmatprep.subr.bf16.mxu0 0
        %769 = vmatpush1.bf16.msra.mxu0 0
        %770 = vmatprep.subr.bf16.mxu0 0
        %771 = vmatpush1.bf16.msra.mxu0 0
        %772 = vmatprep.subr.bf16.mxu0 0
        %773 = vmatpush1.bf16.msra.mxu0 0
        %774 = vmatprep.subr.bf16.mxu0 0
        %775 = vmatpush1.bf16.msra.mxu0 0
        %776 = vmatprep.subr.bf16.mxu0 0
        %777 = vmatpush1.bf16.msra.mxu0 0
        %778 = vmatprep.subr.bf16.mxu0 0
        %779 = vmatpush1.bf16.msra.mxu0 0
        %780 = vmatprep.subr.bf16.mxu0 0
        %781 = vmatpush1.bf16.msra.mxu0 0
        %782 = vmatprep.mubr.bf16.mxu0 0
        %783 = vmatmul.mubr.bf16.gmra.mrb[0].mxu0 %v678
        %v784 = vpop.f32.mrb[0].mxu0
        %v785 = vadd.f32 %v700, %v784
        %v786 = vpop.f32.mrb[0].mxu0
        %v787 = vpop.f32.mrb[0].mxu0
        %v788 = vpop.f32.mrb[0].mxu0
        %789 = vdwg.mxu0
        %v790 = vadd.f32 %v562, %v785
        %v791 = vpack.c.bf16 %v790, %v790
        %v792 = vld [vmem:[%s459] sm:$0xf]
        %v793 = vld [vmem:[%s459 + $0x4] sm:$0xf]
        %v794 = vld [vmem:[%s459 + $0x8] sm:$0xf]
        %v795 = vld [vmem:[%s459 + $0xc] sm:$0xf]
        %v796 = vld [vmem:[%s459 + $0x10] sm:$0xf]
        %v797 = vld [vmem:[%s459 + $0x14] sm:$0xf]
        %v798 = vld [vmem:[%s459 + $0x18] sm:$0xf]
        %v799 = vld [vmem:[%s459 + $0x1c] sm:$0xf]
        %v800 = vld [vmem:[%s459 + $0x20] sm:$0xf]
        %v801 = vld [vmem:[%s459 + $0x24] sm:$0xf]
        %v802 = vld [vmem:[%s459 + $0x28] sm:$0xf]
        %v803 = vld [vmem:[%s459 + $0x2c] sm:$0xf]
        %v804 = vld [vmem:[%s459 + $0x30] sm:$0xf]
        %v805 = vld [vmem:[%s459 + $0x34] sm:$0xf]
        %v806 = vld [vmem:[%s459 + $0x38] sm:$0xf]
        %v807 = vld [vmem:[%s459 + $0x3c] sm:$0xf]
        %v808 = vld [vmem:[%s545] sm:$0x1]
        %v810 = vlaneseq
        %v811 = vshrl.u32 %v810, 7
        %v812 = vsub.s32 0, %v811
        %v813 = vrot.slane %v808, %v812
        %v831 = vunpack.c.l.b16 %v792
        %v832 = vunpack.c.l.b16 %v793
        %v833 = vunpack.c.l.b16 %v794
        %v834 = vunpack.c.l.b16 %v795
        %v835 = vunpack.c.l.b16 %v796
        %v836 = vunpack.c.l.b16 %v797
        %v837 = vunpack.c.l.b16 %v798
        %v838 = vunpack.c.l.b16 %v799
        %v839 = vunpack.c.l.b16 %v800
        %v840 = vunpack.c.l.b16 %v801
        %v841 = vunpack.c.l.b16 %v802
        %v842 = vunpack.c.l.b16 %v803
        %v843 = vunpack.c.l.b16 %v804
        %v844 = vunpack.c.l.b16 %v805
        %v845 = vunpack.c.l.b16 %v806
        %v846 = vunpack.c.l.b16 %v807
        %v847 = vpack.c.b16 %v832, %v831
        %v848 = vpack.c.b16 %v834, %v833
        %v849 = vpack.c.b16 %v836, %v835
        %v850 = vpack.c.b16 %v838, %v837
        %v851 = vpack.c.b16 %v840, %v839
        %v852 = vpack.c.b16 %v842, %v841
        %v853 = vpack.c.b16 %v844, %v843
        %v854 = vpack.c.b16 %v846, %v845
        %863 = vmatprep.subr.bf16.mxu0 0
        %864 = vmatpush1.bf16.msra.mxu0 %v847
        %865 = vmatprep.subr.bf16.mxu0 0
        %866 = vmatpush1.bf16.msra.mxu0 %v848
        %867 = vmatprep.subr.bf16.mxu0 0
        %868 = vmatpush1.bf16.msra.mxu0 %v849
        %869 = vmatprep.subr.bf16.mxu0 0
        %870 = vmatpush1.bf16.msra.mxu0 %v850
        %871 = vmatprep.subr.bf16.mxu0 0
        %872 = vmatpush1.bf16.msra.mxu0 %v851
        %873 = vmatprep.subr.bf16.mxu0 0
        %874 = vmatpush1.bf16.msra.mxu0 %v852
        %875 = vmatprep.subr.bf16.mxu0 0
        %876 = vmatpush1.bf16.msra.mxu0 %v853
        %877 = vmatprep.subr.bf16.mxu0 0
        %878 = vmatpush1.bf16.msra.mxu0 %v854
        %879 = vmatprep.subr.bf16.mxu0 0
        %880 = vmatpush1.bf16.msra.mxu0 0
        %881 = vmatprep.subr.bf16.mxu0 0
        %882 = vmatpush1.bf16.msra.mxu0 0
        %883 = vmatprep.subr.bf16.mxu0 0
        %884 = vmatpush1.bf16.msra.mxu0 0
        %885 = vmatprep.subr.bf16.mxu0 0
        %886 = vmatpush1.bf16.msra.mxu0 0
        %887 = vmatprep.subr.bf16.mxu0 0
        %888 = vmatpush1.bf16.msra.mxu0 0
        %889 = vmatprep.subr.bf16.mxu0 0
        %890 = vmatpush1.bf16.msra.mxu0 0
        %891 = vmatprep.subr.bf16.mxu0 0
        %892 = vmatpush1.bf16.msra.mxu0 0
        %893 = vmatprep.subr.bf16.mxu0 0
        %894 = vmatpush1.bf16.msra.mxu0 0
        %895 = vmatprep.mubr.bf16.mxu0 0
        %896 = vmatmul.mubr.bf16.gmra.mrb[0].mxu0 %v791
        %v897 = vpop.f32.mrb[0].mxu0
        %v898 = vadd.f32 %v813, %v897
        %v899 = vpop.f32.mrb[0].mxu0
        %v900 = vpop.f32.mrb[0].mxu0
        %v901 = vpop.f32.mrb[0].mxu0
        %902 = vdwg.mxu0
        %v903 = vmax.f32 %v898, 0.0
        %v904 = vpack.c.bf16 %v903, %v903
        %v905 = vld [vmem:[%s468] sm:$0xf]
        %v906 = vld [vmem:[%s468 + $0x4] sm:$0xf]
        %v907 = vld [vmem:[%s468 + $0x8] sm:$0xf]
        %v908 = vld [vmem:[%s468 + $0xc] sm:$0xf]
        %v909 = vld [vmem:[%s468 + $0x10] sm:$0xf]
        %v910 = vld [vmem:[%s468 + $0x14] sm:$0xf]
        %v911 = vld [vmem:[%s468 + $0x18] sm:$0xf]
        %v912 = vld [vmem:[%s468 + $0x1c] sm:$0xf]
        %v913 = vld [vmem:[%s468 + $0x20] sm:$0xf]
        %v914 = vld [vmem:[%s468 + $0x24] sm:$0xf]
        %v915 = vld [vmem:[%s468 + $0x28] sm:$0xf]
        %v916 = vld [vmem:[%s468 + $0x2c] sm:$0xf]
        %v917 = vld [vmem:[%s468 + $0x30] sm:$0xf]
        %v918 = vld [vmem:[%s468 + $0x34] sm:$0xf]
        %v919 = vld [vmem:[%s468 + $0x38] sm:$0xf]
        %v920 = vld [vmem:[%s468 + $0x3c] sm:$0xf]
        %v921 = vld [vmem:[%s548] sm:$0x1]
        %v923 = vlaneseq
        %v924 = vshrl.u32 %v923, 7
        %v925 = vsub.s32 0, %v924
        %v926 = vrot.slane %v921, %v925
        %v944 = vunpack.c.l.b16 %v905
        %v945 = vunpack.c.l.b16 %v906
        %v946 = vunpack.c.l.b16 %v907
        %v947 = vunpack.c.l.b16 %v908
        %v948 = vunpack.c.l.b16 %v909
        %v949 = vunpack.c.l.b16 %v910
        %v950 = vunpack.c.l.b16 %v911
        %v951 = vunpack.c.l.b16 %v912
        %v952 = vunpack.c.l.b16 %v913
        %v953 = vunpack.c.l.b16 %v914
        %v954 = vunpack.c.l.b16 %v915
        %v955 = vunpack.c.l.b16 %v916
        %v956 = vunpack.c.l.b16 %v917
        %v957 = vunpack.c.l.b16 %v918
        %v958 = vunpack.c.l.b16 %v919
        %v959 = vunpack.c.l.b16 %v920
        %v960 = vpack.c.b16 %v945, %v944
        %v961 = vpack.c.b16 %v947, %v946
        %v962 = vpack.c.b16 %v949, %v948
        %v963 = vpack.c.b16 %v951, %v950
        %v964 = vpack.c.b16 %v953, %v952
        %v965 = vpack.c.b16 %v955, %v954
        %v966 = vpack.c.b16 %v957, %v956
        %v967 = vpack.c.b16 %v959, %v958
        %976 = vmatprep.subr.bf16.mxu0 0
        %977 = vmatpush1.bf16.msra.mxu0 %v960
        %978 = vmatprep.subr.bf16.mxu0 0
        %979 = vmatpush1.bf16.msra.mxu0 %v961
        %980 = vmatprep.subr.bf16.mxu0 0
        %981 = vmatpush1.bf16.msra.mxu0 %v962
        %982 = vmatprep.subr.bf16.mxu0 0
        %983 = vmatpush1.bf16.msra.mxu0 %v963
        %984 = vmatprep.subr.bf16.mxu0 0
        %985 = vmatpush1.bf16.msra.mxu0 %v964
        %986 = vmatprep.subr.bf16.mxu0 0
        %987 = vmatpush1.bf16.msra.mxu0 %v965
        %988 = vmatprep.subr.bf16.mxu0 0
        %989 = vmatpush1.bf16.msra.mxu0 %v966
        %990 = vmatprep.subr.bf16.mxu0 0
        %991 = vmatpush1.bf16.msra.mxu0 %v967
        %992 = vmatprep.subr.bf16.mxu0 0
        %993 = vmatpush1.bf16.msra.mxu0 0
        %994 = vmatprep.subr.bf16.mxu0 0
        %995 = vmatpush1.bf16.msra.mxu0 0
        %996 = vmatprep.subr.bf16.mxu0 0
        %997 = vmatpush1.bf16.msra.mxu0 0
        %998 = vmatprep.subr.bf16.mxu0 0
        %999 = vmatpush1.bf16.msra.mxu0 0
        %1000 = vmatprep.subr.bf16.mxu0 0
        %1001 = vmatpush1.bf16.msra.mxu0 0
        %1002 = vmatprep.subr.bf16.mxu0 0
        %1003 = vmatpush1.bf16.msra.mxu0 0
        %1004 = vmatprep.subr.bf16.mxu0 0
        %1005 = vmatpush1.bf16.msra.mxu0 0
        %1006 = vmatprep.subr.bf16.mxu0 0
        %1007 = vmatpush1.bf16.msra.mxu0 0
        %1008 = vmatprep.mubr.bf16.mxu0 0
        %1009 = vmatmul.mubr.bf16.gmra.mrb[0].mxu0 %v904
        %v1010 = vpop.f32.mrb[0].mxu0
        %v1011 = vadd.f32 %v926, %v1010
        %v1012 = vpop.f32.mrb[0].mxu0
        %v1013 = vpop.f32.mrb[0].mxu0
        %v1014 = vpop.f32.mrb[0].mxu0
        %1015 = vdwg.mxu0
        %v1016 = vadd.f32 %v564, %v1011
        %1017 = vst [vmem:[%s552] sm:$0xff] %v790
        %1018 = vst [vmem:[%s563] sm:$0xff] %v1016
        %p1019 = scmp.lt.s32.totalorder %s33, 0
        %s1020 = scalar_select %p1019, %s33, 0
        %s1021 = smul.addr %s1020, 8
        %s1022 = scalar_lea.vmem %s9, %s1021
        // Predicated region
        $region77: #{revnet_forward.1} parent=55 // pred_check
          %p1023 = pneg %p293
        $region78: #{revnet_forward.1} parent=55 // pred_check_branch
          %1025 = sbr.rel (%p1023) target = $region80
        $region79: #{revnet_forward.1} parent=55 // pred_region
          _
        $region80: #{revnet_forward.1} parent=55 // pred_fallthru
          _
        // Predicated region
        $region81: #{revnet_forward.1} parent=55 // pred_check
          %p1026 = pneg %p293
        $region82: #{revnet_forward.1} parent=55 // pred_check_branch
          %1028 = sbr.rel (%p1026) target = $region84
        $region83: #{revnet_forward.1} parent=55 // pred_region
          %p1029 = scmp.lt.s32.totalorder %s33, 0
          %s1030 = scalar_select %p1029, %s33, 0
          %s1031 = smul.addr %s1030, 8
          %s1032 = scalar_lea.vmem %s9, %s1031
        $region84: #{revnet_forward.1} parent=55 // pred_fallthru
          _
      $region56: #{revnet_forward.1} parent=5 // pred_fallthru
        _
      %p1033 = scmp.le.s32.totalorder 2, %s24
      // Predicated region
      $region85: #{revnet_forward.1} parent=5 // pred_check
        %p1034 = pneg %p1033
      $region86: #{revnet_forward.1} parent=5 // pred_check_branch
        %1036 = sbr.rel (%p1034) target = $region88
      $region87: #{revnet_forward.1} parent=5 // pred_region
        %s1037 = ssub.s32 %s24, 2
      $region88: #{revnet_forward.1} parent=5 // pred_fallthru
        _
    $region6: #{revnet_forward.1} parent=1 // loop_footer
      %s28 = sadd.s32 1, %s24
    $region7: #{revnet_forward.1} parent=1 // loop_footer_branch
      %23 = sbr.rel target = $region3
    $region8: #{revnet_forward.1} parent=1 // loop_exit
      _
    %1038 = vsyncpa [#allocation3], 1
    %s1039 = scalar_lea.sflag [#allocation3], 1
    %1040 = vsyncpa %s1039, 1
    %1041 = vsyncpa [#allocation5], 1
    %s1042 = scalar_lea.sflag [#allocation5], 1
    %1043 = vsyncpa %s1042, 1
    %1044 = vsyncpa [#allocation8], 1
    %s1045 = scalar_lea.sflag [#allocation8], 1
    %1046 = vsyncpa %s1045, 1

</llo_original>
